<compile_context>
chip_gen: v7x
topology: tpu7x:2x2x1
jax: 0.10.0
libtpu: 0.0.40
codegen_flags: <defaults>
</compile_context>

<pallas_src>
import jax
import jax.numpy as jnp
from jax.experimental import pallas as pl
from jax.experimental.pallas import tpu as pltpu

KERNEL_SIZE = 5  # nn.Conv2d(..., kernel_size=5, stride=1, padding=2)


# ----------------------------- Pallas kernel -------------------------------- #
def _fused_conv_fc_kernel(xw_ref, wband_ref, bconv_ref, wfc_ref, bfc_ref, o_ref):
    """Fused conv5x5(pad=2) + bias + ReLU + flatten + Linear (class logits).

    xw_ref:    (N*H, kh*(W+4)*Cin) bf16   stacked shifted windows,
                                          rows=(n,h), lanes=(ki, w', ci)
    wband_ref: (kh*(W+4)*Cin, W*Cout) bf16  block-banded conv weight
    bconv_ref: (1, W*Cout)       f32      conv bias tiled over w
    wfc_ref:   (ncls, H, W*Cout) f32      fc_1_train weight in (h, (w, c)) layout
    bfc_ref:   (1, ncls)         f32
    o_ref:     (N, ncls)         f32      logits
    """
    n_batch, ncls = o_ref.shape
    h = wfc_ref.shape[1]

    # ---- conv: ONE lane-dense MXU matmul, f32 accumulation ----
    acc = jnp.dot(xw_ref[...], wband_ref[...],
                  preferred_element_type=jnp.float32)          # (N*H, W*Cout)
    act = jnp.maximum(acc + bconv_ref[...], 0.0)               # bias + ReLU, f32 (VPU)

    # ---- fc_1_train: VPU multiply, reduce H (sublanes) first, lanes last ----
    # act[h, w*Cout + c] already matches the (c, h, w)-flatten-permuted FC
    # weight prepared at setup, so no in-kernel flatten / relayout is needed.
    rows = []
    for n in range(n_batch):                                   # N = 2, static
        a_n = act[n * h:(n + 1) * h, :]                        # 8-aligned free view (H, W*Cout)
        cols = []
        for c in range(ncls):                                  # ncls = 2, static
            p = a_n * wfc_ref[c]                               # (H, W*Cout) f32
            s_h = jnp.sum(p, axis=0, keepdims=True)            # (1, W*Cout): sublane reduce
            cols.append(jnp.sum(s_h, axis=1, keepdims=True))   # (1, 1): lane reduce on 1 row
        rows.append(jnp.concatenate(cols, axis=1))             # (1, ncls)
    logits = jnp.concatenate(rows, axis=0)                     # (N, ncls)

    o_ref[...] = logits + bfc_ref[...]                         # single store

    # TODO(synk): encode() path (fc_1_encode -> fc_2_encode) is not exercised by
    # forward(); it would be one more fused matmul stage on `act` if needed.


# --------------------------- one-time parameter prep ------------------------ #
def prepare_params(params, im_h, im_w, compute_dtype=jnp.bfloat16):
    """Hoist all weight layout work out of the per-step forward (paid once)."""
    conv_w = params["conv_w"]                       # (Cout, Cin, kh, kw) PyTorch layout
    cout, cin, kh, kw = conv_w.shape
    w, h = im_w, im_h

    # Block-banded conv weight folded over the kh taps:
    # wband[(ki, w', ci), (w, co)] = conv_w[co, ci, ki, w'-w]  for 0 <= w'-w < kw.
    wt = jnp.transpose(conv_w, (2, 3, 1, 0)).astype(jnp.float32)   # (kh, kw, Cin, Cout)
    onehot = (
        jnp.arange(w + kw - 1)[:, None, None]
        == (jnp.arange(kw)[None, :, None] + jnp.arange(w)[None, None, :])
    ).astype(jnp.float32)                                          # (W+4, kw, W)
    wband = jnp.einsum("pjw,kjcd->kpcwd", onehot, wt)              # (kh, W+4, Cin, W, Cout)
    wband = wband.reshape(kh * (w + kw - 1) * cin, w * cout)       # (400, 128): single matmul RHS

    # Conv bias tiled to the (w, c) lane layout.
    bconv = jnp.tile(params["conv_b"].astype(jnp.float32), w).reshape(1, w * cout)

    # fc_1_train weight: PyTorch flatten order is (c, h, w); permute columns to
    # the kernel's (h, (w, c)) activation layout.  Kept in f32 (VPU path, v5e-safe).
    fc_w = params["fc1_train_w"]                                   # (ncls, Cout*H*W)
    ncls = fc_w.shape[0]
    wfc = (
        fc_w.reshape(ncls, cout, h, w)
        .transpose(0, 2, 3, 1)                                     # (ncls, H, W, Cout)
        .reshape(ncls, h, w * cout)
        .astype(jnp.float32)
    )
    bfc = params["fc1_train_b"].reshape(1, ncls).astype(jnp.float32)

    return {
        "wband": wband.astype(compute_dtype),                      # bf16 MXU operand
        "bconv": bconv,
        "wfc": wfc,
        "bfc": bfc,
    }


# ------------------------------ forward wrapper ------------------------------ #
def one_layer_encoder_forward(prep, x_nchw):
    """Pallas implementation of OneLayerEncoder.forward (class logits)."""
    n, cin, h, w = x_nchw.shape
    kh = KERNEL_SIZE
    pad = (kh - 1) // 2
    ncls = prep["wfc"].shape[0]

    # Input prologue: one fused XLA chain of layout-only ops (transpose, pad,
    # shifted-window stack, reshape, single bf16 cast).  If upstream ever hands
    # us NHWC directly, the transpose disappears and this is a free reshape.
    xh = jnp.transpose(x_nchw, (0, 2, 3, 1))                        # (N, H, W, Cin)
    xp = jnp.pad(xh, ((0, 0), (pad, pad), (pad, pad), (0, 0)))      # (N, H+4, W+4, Cin)
    xw = jnp.stack([xp[:, ki:ki + h] for ki in range(kh)], axis=2)  # (N, H, kh, W+4, Cin)
    xw = xw.reshape(n * h, kh * (w + 2 * pad) * cin).astype(jnp.bfloat16)  # (32, 400) bf16

    return pl.pallas_call(
        _fused_conv_fc_kernel,
        out_shape=jax.ShapeDtypeStruct((n, ncls), jnp.float32),
        # Gridless: every operand is a single full-extent VMEM-resident block
        # (~150 KB total, dominated by the ~100 KB bf16 banded conv weight).
        in_specs=[pl.BlockSpec(memory_space=pltpu.MemorySpace.VMEM)] * 5,
        out_specs=pl.BlockSpec(memory_space=pltpu.MemorySpace.VMEM),
    )(xw, prep["wband"], prep["bconv"], prep["wfc"], prep["bfc"])


# ------------------------------ parameters ---------------------------------- #
def init_params(key, in_channel, channel_1, im_h, im_w, num_classes, num_dims):
    """Deterministic synthetic parameters with the shapes from __init__."""
    ks = jax.random.split(key, 8)
    flat = im_h * im_w * channel_1
    return {
        # nn.Conv2d(in_channel, channel_1, kernel_size=5, stride=1, padding=2)
        "conv_w": jax.random.normal(ks[0], (channel_1, in_channel, 5, 5), jnp.float32) * 0.05,
        "conv_b": jax.random.normal(ks[1], (channel_1,), jnp.float32) * 0.05,
        # nn.Linear(im_h*im_w*channel_1, num_classes)   (used by forward)
        "fc1_train_w": jax.random.normal(ks[2], (num_classes, flat), jnp.float32) * 0.02,
        "fc1_train_b": jax.random.normal(ks[3], (num_classes,), jnp.float32) * 0.02,
        # encode-path params exist in the module but are unused by forward()
        "fc1_encode_w": jax.random.normal(ks[4], (100, flat), jnp.float32) * 0.02,
        "fc1_encode_b": jax.random.normal(ks[5], (100,), jnp.float32) * 0.02,
        "fc2_encode_w": jax.random.normal(ks[6], (num_dims, 100), jnp.float32) * 0.02,
        "fc2_encode_b": jax.random.normal(ks[7], (num_dims,), jnp.float32) * 0.02,
    }


# ---------------------------- pure-JAX reference ----------------------------- #
def _reference_forward(params, x_nchw):
    y = jax.lax.conv_general_dilated(
        x_nchw, params["conv_w"], window_strides=(1, 1),
        padding=((2, 2), (2, 2)), dimension_numbers=("NCHW", "OIHW", "NCHW"))
    y = jnp.maximum(y + params["conv_b"][None, :, None, None], 0.0)
    flat = y.reshape(y.shape[0], -1)                      # PyTorch (c, h, w) flatten
    return flat @ params["fc1_train_w"].T + params["fc1_train_b"]


# ------------------------------- main --------------------------------------- #
if __name__ == "__main__":
    batch, in_channel, channel_1 = 2, 4, 8
    im_h = im_w = 16
    num_classes = 2   # len(['no break', 'break'])
    num_dims = 3

    key = jax.random.PRNGKey(0)
    k_param, k_x = jax.random.split(key)
    params = init_params(k_param, in_channel, channel_1, im_h, im_w, num_classes, num_dims)
    prep = prepare_params(params, im_h, im_w)             # one-time weight layout work
    x = jax.random.normal(k_x, (batch, in_channel, im_h, im_w), jnp.float32)

    fwd = jax.jit(one_layer_encoder_forward)
    logits = fwd(prep, x)
    jax.block_until_ready(logits)

    assert logits.shape == (batch, num_classes), logits.shape
    assert bool(jnp.all(jnp.isfinite(logits)))

    ref = _reference_forward(params, x)
    err = float(jnp.max(jnp.abs(logits - ref)))
    assert err < 5e-2, f"max abs error vs reference = {err}"
    print("KERNEL_OK")
</pallas_src>

<mosaic_0001>
module attributes {stable_mosaic.version = 11 : i64} {
  func.func @_fused_conv_fc_kernel(%arg0: memref<32x400xbf16, #tpu.memory_space<vmem>>, %arg1: memref<400x128xbf16, #tpu.memory_space<vmem>>, %arg2: memref<1x128xf32, #tpu.memory_space<vmem>>, %arg3: memref<2x16x128xf32, #tpu.memory_space<vmem>>, %arg4: memref<1x2xf32, #tpu.memory_space<vmem>>, %arg5: memref<2x2xf32, #tpu.memory_space<vmem>>) attributes {dimension_semantics = [], scalar_prefetch = 0 : i64, scratch_operands = 0 : i64, tpu.core_type = #tpu.core_type<tc>} {
    %c0 = arith.constant 0 : index
    %c0_0 = arith.constant 0 : index
    %0 = vector.load %arg0[%c0, %c0_0] : memref<32x400xbf16, #tpu.memory_space<vmem>>, vector<32x400xbf16>
    %c0_1 = arith.constant 0 : index
    %c0_2 = arith.constant 0 : index
    %1 = vector.load %arg1[%c0_1, %c0_2] : memref<400x128xbf16, #tpu.memory_space<vmem>>, vector<400x128xbf16>
    %cst = arith.constant dense<0.000000e+00> : vector<32x128xf32>
    %2 = tpu.matmul %0, %1, %cst {dimension_numbers = #tpu.dot_dimension_numbers<[1], [0], [0], [1], [0, 0, 1, 1], [], []>} : vector<32x400xbf16>, vector<400x128xbf16>, vector<32x128xf32> -> vector<32x128xf32>
    %c0_3 = arith.constant 0 : index
    %c0_4 = arith.constant 0 : index
    %3 = vector.load %arg2[%c0_3, %c0_4] : memref<1x128xf32, #tpu.memory_space<vmem>>, vector<1x128xf32>
    %4 = vector.broadcast %3 : vector<1x128xf32> to vector<32x128xf32>
    %5 = arith.addf %2, %4 : vector<32x128xf32>
    %cst_5 = arith.constant 0.000000e+00 : f32
    %6 = vector.broadcast %cst_5 : f32 to vector<32x128xf32>
    %7 = arith.maximumf %5, %6 : vector<32x128xf32>
    %8 = vector.extract_strided_slice %7 {offsets = [0, 0], sizes = [16, 128], strides = [1, 1]} : vector<32x128xf32> to vector<16x128xf32>
    %c0_6 = arith.constant 0 : index
    %c0_7 = arith.constant 0 : index
    %c0_8 = arith.constant 0 : index
    %9 = vector.load %arg3[%c0_6, %c0_7, %c0_8] : memref<2x16x128xf32, #tpu.memory_space<vmem>>, vector<1x16x128xf32>
    %10 = vector.shape_cast %9 : vector<1x16x128xf32> to vector<16x128xf32>
    %11 = arith.mulf %8, %10 : vector<16x128xf32>
    %cst_9 = arith.constant dense<0.000000e+00> : vector<128xf32>
    %12 = vector.multi_reduction <add>, %11, %cst_9 [0] : vector<16x128xf32> to vector<128xf32>
    %13 = vector.shape_cast %12 : vector<128xf32> to vector<1x128xf32>
    %cst_10 = arith.constant dense<0.000000e+00> : vector<1xf32>
    %14 = vector.multi_reduction <add>, %13, %cst_10 [1] : vector<1x128xf32> to vector<1xf32>
    %15 = vector.shape_cast %14 : vector<1xf32> to vector<1x1xf32>
    %c1 = arith.constant 1 : index
    %c0_11 = arith.constant 0 : index
    %c0_12 = arith.constant 0 : index
    %16 = vector.load %arg3[%c1, %c0_11, %c0_12] : memref<2x16x128xf32, #tpu.memory_space<vmem>>, vector<1x16x128xf32>
    %17 = vector.shape_cast %16 : vector<1x16x128xf32> to vector<16x128xf32>
    %18 = arith.mulf %8, %17 : vector<16x128xf32>
    %cst_13 = arith.constant dense<0.000000e+00> : vector<128xf32>
    %19 = vector.multi_reduction <add>, %18, %cst_13 [0] : vector<16x128xf32> to vector<128xf32>
    %20 = vector.shape_cast %19 : vector<128xf32> to vector<1x128xf32>
    %cst_14 = arith.constant dense<0.000000e+00> : vector<1xf32>
    %21 = vector.multi_reduction <add>, %20, %cst_14 [1] : vector<1x128xf32> to vector<1xf32>
    %22 = vector.shape_cast %21 : vector<1xf32> to vector<1x1xf32>
    %23 = tpu.concatenate %15, %22 in 1 : vector<1x1xf32>, vector<1x1xf32> -> vector<1x2xf32>
    %24 = vector.extract_strided_slice %7 {offsets = [16, 0], sizes = [16, 128], strides = [1, 1]} : vector<32x128xf32> to vector<16x128xf32>
    %c0_15 = arith.constant 0 : index
    %c0_16 = arith.constant 0 : index
    %c0_17 = arith.constant 0 : index
    %25 = vector.load %arg3[%c0_15, %c0_16, %c0_17] : memref<2x16x128xf32, #tpu.memory_space<vmem>>, vector<1x16x128xf32>
    %26 = vector.shape_cast %25 : vector<1x16x128xf32> to vector<16x128xf32>
    %27 = arith.mulf %24, %26 : vector<16x128xf32>
    %cst_18 = arith.constant dense<0.000000e+00> : vector<128xf32>
    %28 = vector.multi_reduction <add>, %27, %cst_18 [0] : vector<16x128xf32> to vector<128xf32>
    %29 = vector.shape_cast %28 : vector<128xf32> to vector<1x128xf32>
    %cst_19 = arith.constant dense<0.000000e+00> : vector<1xf32>
    %30 = vector.multi_reduction <add>, %29, %cst_19 [1] : vector<1x128xf32> to vector<1xf32>
    %31 = vector.shape_cast %30 : vector<1xf32> to vector<1x1xf32>
    %c1_20 = arith.constant 1 : index
    %c0_21 = arith.constant 0 : index
    %c0_22 = arith.constant 0 : index
    %32 = vector.load %arg3[%c1_20, %c0_21, %c0_22] : memref<2x16x128xf32, #tpu.memory_space<vmem>>, vector<1x16x128xf32>
    %33 = vector.shape_cast %32 : vector<1x16x128xf32> to vector<16x128xf32>
    %34 = arith.mulf %24, %33 : vector<16x128xf32>
    %cst_23 = arith.constant dense<0.000000e+00> : vector<128xf32>
    %35 = vector.multi_reduction <add>, %34, %cst_23 [0] : vector<16x128xf32> to vector<128xf32>
    %36 = vector.shape_cast %35 : vector<128xf32> to vector<1x128xf32>
    %cst_24 = arith.constant dense<0.000000e+00> : vector<1xf32>
    %37 = vector.multi_reduction <add>, %36, %cst_24 [1] : vector<1x128xf32> to vector<1xf32>
    %38 = vector.shape_cast %37 : vector<1xf32> to vector<1x1xf32>
    %39 = tpu.concatenate %31, %38 in 1 : vector<1x1xf32>, vector<1x1xf32> -> vector<1x2xf32>
    %40 = tpu.concatenate %23, %39 in 0 : vector<1x2xf32>, vector<1x2xf32> -> vector<2x2xf32>
    %c0_25 = arith.constant 0 : index
    %c0_26 = arith.constant 0 : index
    %41 = vector.load %arg4[%c0_25, %c0_26] : memref<1x2xf32, #tpu.memory_space<vmem>>, vector<1x2xf32>
    %42 = vector.broadcast %41 : vector<1x2xf32> to vector<2x2xf32>
    %43 = arith.addf %40, %42 : vector<2x2xf32>
    %c0_27 = arith.constant 0 : index
    %c0_28 = arith.constant 0 : index
    %44 = vector.load %arg5[%c0_27, %c0_28] : memref<2x2xf32, #tpu.memory_space<vmem>>, vector<2x2xf32>
    tpu.vector_store %arg5[%c0_27, %c0_28], %43 {strides = array<i32>} : memref<2x2xf32, #tpu.memory_space<vmem>>, vector<2x2xf32>,
    return
  }
}

</mosaic_0001>

<llo_original>
// kernel: one_layer_encoder_forward.1
$region0: #{one_layer_encoder_forward.1}
  #allocation0 [shape = 'u32[]', space=smem, size = 0x4, offset = 0x4, fixed_abs, tag = 'smem constant byte address 0x4 - core index']
  #allocation1 [shape = 'u32[144,128]{1,0:T(1,128)}', space=vmem, size = 0x12000, scoped, tag = 'internal scratch']
  %s0 = inlined_call_operand.vmem [shape: bf16[32,400], index: 0, kind: input, shape index: {}]
  %s1 = inlined_call_operand.vmem [shape: bf16[400,128], index: 1, kind: input, shape index: {}]
  %s2 = inlined_call_operand.vmem [shape: f32[1,128], index: 2, kind: input, shape index: {}]
  %s3 = inlined_call_operand.vmem [shape: f32[2,16,128], index: 3, kind: input, shape index: {}]
  %s4 = inlined_call_operand.vmem [shape: f32[1,2], index: 4, kind: input, shape index: {}]
  %s5 = inlined_call_operand.hbm [shape: f32[2,2], index: 5, kind: output, shape index: {}]
  %s6 = sld [smem:[#allocation0]]
  $region30: #{one_layer_encoder_forward.1} parent=0
    _
  %s8 = ssub.s32 1, %s6
  %s9 = scalar_select 0, %s8, %s6
  $region1: #{one_layer_encoder_forward.1} parent=0
    #allocation2 [shape = 'u8[1024]{0}', space=vmem, size = 0x400, scoped, tag = 'output window, operand 0, single buffered']
    #allocation3 [shape = 's32[1]{0}', space=sflag, size = 0x4, scoped, tag = 'scoped memory for one_layer_encoder_forward.1']
    %10 = vsyncpa [#allocation3], 0
    // Predicated region
    $region2: #{one_layer_encoder_forward.1} parent=1 // pred_check
      _
    $region3: #{one_layer_encoder_forward.1} parent=1 // pred_check_branch
      %12 = sbr.rel (0) target = $region5
    $region4: #{one_layer_encoder_forward.1} parent=1 // pred_region
      _
    $region5: #{one_layer_encoder_forward.1} parent=1 // pred_fallthru
      _
    // Predicated region
    $region6: #{one_layer_encoder_forward.1} parent=1 // pred_check
      _
    $region7: #{one_layer_encoder_forward.1} parent=1 // pred_check_branch
      %14 = sbr.rel (0) target = $region9
    $region8: #{one_layer_encoder_forward.1} parent=1 // pred_region
      _
    $region9: #{one_layer_encoder_forward.1} parent=1 // pred_fallthru
      _
    // Predicated region
    $region10: #{one_layer_encoder_forward.1} parent=1 // pred_check
      _
    $region11: #{one_layer_encoder_forward.1} parent=1 // pred_check_branch
      %16 = sbr.rel (0) target = $region13
    $region12: #{one_layer_encoder_forward.1} parent=1 // pred_region
      _
    $region13: #{one_layer_encoder_forward.1} parent=1 // pred_fallthru
      _
    // Predicated region
    $region14: #{one_layer_encoder_forward.1} parent=1 // pred_check
      _
    $region15: #{one_layer_encoder_forward.1} parent=1 // pred_check_branch
      %18 = sbr.rel (0) target = $region17
    $region16: #{one_layer_encoder_forward.1} parent=1 // pred_region
      _
    $region17: #{one_layer_encoder_forward.1} parent=1 // pred_fallthru
      _
    // Predicated region
    $region18: #{one_layer_encoder_forward.1} parent=1 // pred_check
      _
    $region19: #{one_layer_encoder_forward.1} parent=1 // pred_check_branch
      %20 = sbr.rel (0) target = $region21
    $region20: #{one_layer_encoder_forward.1} parent=1 // pred_region
      _
    $region21: #{one_layer_encoder_forward.1} parent=1 // pred_fallthru
      _
    %v22 = vld [vmem:[%s0] sm:$0xff]
    %v23 = vld [vmem:[%s0 + $0x8] sm:$0xff]
    %v24 = vld [vmem:[%s0 + $0x10] sm:$0xff]
    %v25 = vld [vmem:[%s0 + $0x18] sm:$0xff]
    %v26 = vld [vmem:[%s0 + $0x20] sm:$0xff]
    %v27 = vld [vmem:[%s0 + $0x28] sm:$0xff]
    %v28 = vld [vmem:[%s0 + $0x30] sm:$0xff]
    %v29 = vld [vmem:[%s0 + $0x38] sm:$0xff]
    %v30 = vld [vmem:[%s1] sm:$0xf]
    %v31 = vld [vmem:[%s1 + $0x4] sm:$0xf]
    %v32 = vld [vmem:[%s1 + $0x8] sm:$0xf]
    %v33 = vld [vmem:[%s1 + $0xc] sm:$0xf]
    %v34 = vld [vmem:[%s1 + $0x10] sm:$0xf]
    %v35 = vld [vmem:[%s1 + $0x14] sm:$0xf]
    %v36 = vld [vmem:[%s1 + $0x18] sm:$0xf]
    %v37 = vld [vmem:[%s1 + $0x1c] sm:$0xf]
    %v38 = vld [vmem:[%s1 + $0x20] sm:$0xf]
    %v39 = vld [vmem:[%s1 + $0x24] sm:$0xf]
    %v40 = vld [vmem:[%s1 + $0x28] sm:$0xf]
    %v41 = vld [vmem:[%s1 + $0x2c] sm:$0xf]
    %v42 = vld [vmem:[%s1 + $0x30] sm:$0xf]
    %v43 = vld [vmem:[%s1 + $0x34] sm:$0xf]
    %v44 = vld [vmem:[%s1 + $0x38] sm:$0xf]
    %v45 = vld [vmem:[%s1 + $0x3c] sm:$0xf]
    %v46 = vld [vmem:[%s1 + $0x40] sm:$0xf]
    %v47 = vld [vmem:[%s1 + $0x44] sm:$0xf]
    %v48 = vld [vmem:[%s1 + $0x48] sm:$0xf]
    %v49 = vld [vmem:[%s1 + $0x4c] sm:$0xf]
    %v50 = vld [vmem:[%s1 + $0x50] sm:$0xf]
    %v51 = vld [vmem:[%s1 + $0x54] sm:$0xf]
    %v52 = vld [vmem:[%s1 + $0x58] sm:$0xf]
    %v53 = vld [vmem:[%s1 + $0x5c] sm:$0xf]
    %v54 = vld [vmem:[%s1 + $0x60] sm:$0xf]
    %v55 = vld [vmem:[%s1 + $0x64] sm:$0xf]
    %v56 = vld [vmem:[%s1 + $0x68] sm:$0xf]
    %v57 = vld [vmem:[%s1 + $0x6c] sm:$0xf]
    %v58 = vld [vmem:[%s1 + $0x70] sm:$0xf]
    %v59 = vld [vmem:[%s1 + $0x74] sm:$0xf]
    %v60 = vld [vmem:[%s1 + $0x78] sm:$0xf]
    %v61 = vld [vmem:[%s1 + $0x7c] sm:$0xf]
    %v62 = vld [vmem:[%s1 + $0x80] sm:$0xf]
    %v63 = vld [vmem:[%s1 + $0x84] sm:$0xf]
    %v64 = vld [vmem:[%s1 + $0x88] sm:$0xf]
    %v65 = vld [vmem:[%s1 + $0x8c] sm:$0xf]
    %v66 = vld [vmem:[%s1 + $0x90] sm:$0xf]
    %v67 = vld [vmem:[%s1 + $0x94] sm:$0xf]
    %v68 = vld [vmem:[%s1 + $0x98] sm:$0xf]
    %v69 = vld [vmem:[%s1 + $0x9c] sm:$0xf]
    %v70 = vld [vmem:[%s1 + $0xa0] sm:$0xf]
    %v71 = vld [vmem:[%s1 + $0xa4] sm:$0xf]
    %v72 = vld [vmem:[%s1 + $0xa8] sm:$0xf]
    %v73 = vld [vmem:[%s1 + $0xac] sm:$0xf]
    %v74 = vld [vmem:[%s1 + $0xb0] sm:$0xf]
    %v75 = vld [vmem:[%s1 + $0xb4] sm:$0xf]
    %v76 = vld [vmem:[%s1 + $0xb8] sm:$0xf]
    %v77 = vld [vmem:[%s1 + $0xbc] sm:$0xf]
    %v78 = vld [vmem:[%s1 + $0xc0] sm:$0xf]
    %v79 = vld [vmem:[%s1 + $0xc4] sm:$0xf]
    %v80 = vld [vmem:[%s2] sm:$0x1]
    %v82 = vlaneseq
    %v83 = vshrl.u32 %v82, 7
    %v84 = vsub.s32 0, %v83
    %v85 = vrot.slane %v80, %v84
    %v95 = vunpack.c.l.b16 %v22
    %v96 = vunpack.c.h.b16 %v22
    %v97 = vunpack.c.l.b16 %v23
    %v98 = vunpack.c.h.b16 %v23
    %v99 = vunpack.c.l.b16 %v24
    %v100 = vunpack.c.h.b16 %v24
    %v101 = vunpack.c.l.b16 %v25
    %v102 = vunpack.c.h.b16 %v25
    %v103 = vunpack.c.l.b16 %v26
    %v104 = vunpack.c.h.b16 %v26
    %v105 = vunpack.c.l.b16 %v27
    %v106 = vunpack.c.h.b16 %v27
    %v107 = vunpack.c.l.b16 %v28
    %v108 = vunpack.c.h.b16 %v28
    %v109 = vunpack.c.l.b16 %v29
    %v110 = vunpack.c.h.b16 %v29
    %v111 = vpack.c.b16 %v99, %v95
    %v112 = vpack.c.b16 %v100, %v96
    %v113 = vpack.c.b16 %v101, %v97
    %v114 = vpack.c.b16 %v102, %v98
    %v115 = vpack.c.b16 %v107, %v103
    %v116 = vpack.c.b16 %v108, %v104
    %v117 = vpack.c.b16 %v109, %v105
    %v118 = vpack.c.b16 %v110, %v106
    %v175 = vunpack.c.l.b16 %v30
    %v176 = vunpack.c.l.b16 %v31
    %v177 = vunpack.c.l.b16 %v32
    %v178 = vunpack.c.l.b16 %v33
    %v179 = vunpack.c.l.b16 %v34
    %v180 = vunpack.c.l.b16 %v35
    %v181 = vunpack.c.l.b16 %v36
    %v182 = vunpack.c.l.b16 %v37
    %v183 = vunpack.c.l.b16 %v38
    %v184 = vunpack.c.l.b16 %v39
    %v185 = vunpack.c.l.b16 %v40
    %v186 = vunpack.c.l.b16 %v41
    %v187 = vunpack.c.l.b16 %v42
    %v188 = vunpack.c.l.b16 %v43
    %v189 = vunpack.c.l.b16 %v44
    %v190 = vunpack.c.l.b16 %v45
    %v191 = vunpack.c.l.b16 %v46
    %v192 = vunpack.c.l.b16 %v47
    %v193 = vunpack.c.l.b16 %v48
    %v194 = vunpack.c.l.b16 %v49
    %v195 = vunpack.c.l.b16 %v50
    %v196 = vunpack.c.l.b16 %v51
    %v197 = vunpack.c.l.b16 %v52
    %v198 = vunpack.c.l.b16 %v53
    %v199 = vunpack.c.l.b16 %v54
    %v200 = vunpack.c.l.b16 %v55
    %v201 = vunpack.c.l.b16 %v56
    %v202 = vunpack.c.l.b16 %v57
    %v203 = vunpack.c.l.b16 %v58
    %v204 = vunpack.c.l.b16 %v59
    %v205 = vunpack.c.l.b16 %v60
    %v206 = vunpack.c.l.b16 %v61
    %v207 = vunpack.c.l.b16 %v62
    %v208 = vunpack.c.l.b16 %v63
    %v209 = vunpack.c.l.b16 %v64
    %v210 = vunpack.c.l.b16 %v65
    %v211 = vunpack.c.l.b16 %v66
    %v212 = vunpack.c.l.b16 %v67
    %v213 = vunpack.c.l.b16 %v68
    %v214 = vunpack.c.l.b16 %v69
    %v215 = vunpack.c.l.b16 %v70
    %v216 = vunpack.c.l.b16 %v71
    %v217 = vunpack.c.l.b16 %v72
    %v218 = vunpack.c.l.b16 %v73
    %v219 = vunpack.c.l.b16 %v74
    %v220 = vunpack.c.l.b16 %v75
    %v221 = vunpack.c.l.b16 %v76
    %v222 = vunpack.c.l.b16 %v77
    %v223 = vunpack.c.l.b16 %v78
    %v224 = vunpack.c.l.b16 %v79
    %v225 = vpack.c.b16 %v176, %v175
    %v226 = vpack.c.b16 %v178, %v177
    %v227 = vpack.c.b16 %v180, %v179
    %v228 = vpack.c.b16 %v182, %v181
    %v229 = vpack.c.b16 %v184, %v183
    %v230 = vpack.c.b16 %v186, %v185
    %v231 = vpack.c.b16 %v188, %v187
    %v232 = vpack.c.b16 %v190, %v189
    %v233 = vpack.c.b16 %v192, %v191
    %v234 = vpack.c.b16 %v194, %v193
    %v235 = vpack.c.b16 %v196, %v195
    %v236 = vpack.c.b16 %v198, %v197
    %v237 = vpack.c.b16 %v200, %v199
    %v238 = vpack.c.b16 %v202, %v201
    %v239 = vpack.c.b16 %v204, %v203
    %v240 = vpack.c.b16 %v206, %v205
    %v241 = vpack.c.b16 %v208, %v207
    %v242 = vpack.c.b16 %v210, %v209
    %v243 = vpack.c.b16 %v212, %v211
    %v244 = vpack.c.b16 %v214, %v213
    %v245 = vpack.c.b16 %v216, %v215
    %v246 = vpack.c.b16 %v218, %v217
    %v247 = vpack.c.b16 %v220, %v219
    %v248 = vpack.c.b16 %v222, %v221
    %v249 = vpack.c.b16 %v224, %v223
    %vm275 = vcmask 130048
    %v277 = vsel %vm275, %v114, 0
    %v280 = vsel %vm275, %v118, 0
    %282 = vmatprep.subr.bf16.mxu0 0
    %283 = vmatpush1.bf16.msra.mxu0 %v225
    %284 = vmatprep.subr.bf16.mxu0 0
    %285 = vmatpush1.bf16.msra.mxu0 %v226
    %286 = vmatprep.subr.bf16.mxu0 0
    %287 = vmatpush1.bf16.msra.mxu0 %v227
    %288 = vmatprep.subr.bf16.mxu0 0
    %289 = vmatpush1.bf16.msra.mxu0 %v228
    %290 = vmatprep.subr.bf16.mxu0 0
    %291 = vmatpush1.bf16.msra.mxu0 %v229
    %292 = vmatprep.subr.bf16.mxu0 0
    %293 = vmatpush1.bf16.msra.mxu0 %v230
    %294 = vmatprep.subr.bf16.mxu0 0
    %295 = vmatpush1.bf16.msra.mxu0 %v231
    %296 = vmatprep.subr.bf16.mxu0 0
    %297 = vmatpush1.bf16.msra.mxu0 %v232
    %298 = vmatprep.subr.bf16.mxu0 0
    %299 = vmatpush1.bf16.msra.mxu0 %v233
    %300 = vmatprep.subr.bf16.mxu0 0
    %301 = vmatpush1.bf16.msra.mxu0 %v234
    %302 = vmatprep.subr.bf16.mxu0 0
    %303 = vmatpush1.bf16.msra.mxu0 %v235
    %304 = vmatprep.subr.bf16.mxu0 0
    %305 = vmatpush1.bf16.msra.mxu0 %v236
    %306 = vmatprep.subr.bf16.mxu0 0
    %307 = vmatpush1.bf16.msra.mxu0 %v237
    %308 = vmatprep.subr.bf16.mxu0 0
    %309 = vmatpush1.bf16.msra.mxu0 %v238
    %310 = vmatprep.subr.bf16.mxu0 0
    %311 = vmatpush1.bf16.msra.mxu0 %v239
    %312 = vmatprep.subr.bf16.mxu0 0
    %313 = vmatpush1.bf16.msra.mxu0 %v240
    %314 = vmatprep.mubr.bf16.mxu0 %v112
    %315 = vmatmul.mubr.bf16.gmra.mrb[0].mxu0 %v111
    %v316 = vpop.f32.mrb[0].mxu0
    %v317 = vadd.f32 %v85, %v316
    %v318 = vpop.f32.mrb[0].mxu0
    %v319 = vpop.f32.mrb[0].mxu0
    %v320 = vadd.f32 %v85, %v319
    %v321 = vpop.f32.mrb[0].mxu0
    %322 = vmatprep.mubr.bf16.mxu0 %v116
    %323 = vmatmul.mubr.bf16.gmra.mrb[0].mxu0 %v115
    %v324 = vpop.f32.mrb[0].mxu0
    %v325 = vadd.f32 %v85, %v324
    %v326 = vpop.f32.mrb[0].mxu0
    %v327 = vpop.f32.mrb[0].mxu0
    %v328 = vadd.f32 %v85, %v327
    %v329 = vpop.f32.mrb[0].mxu0
    %330 = vdwg.mxu0
    %331 = vmatprep.subr.bf16.mxu0 0
    %332 = vmatpush1.bf16.msra.mxu0 %v241
    %333 = vmatprep.subr.bf16.mxu0 0
    %334 = vmatpush1.bf16.msra.mxu0 %v242
    %335 = vmatprep.subr.bf16.mxu0 0
    %336 = vmatpush1.bf16.msra.mxu0 %v243
    %337 = vmatprep.subr.bf16.mxu0 0
    %338 = vmatpush1.bf16.msra.mxu0 %v244
    %339 = vmatprep.subr.bf16.mxu0 0
    %340 = vmatpush1.bf16.msra.mxu0 %v245
    %341 = vmatprep.subr.bf16.mxu0 0
    %342 = vmatpush1.bf16.msra.mxu0 %v246
    %343 = vmatprep.subr.bf16.mxu0 0
    %344 = vmatpush1.bf16.msra.mxu0 %v247
    %345 = vmatprep.subr.bf16.mxu0 0
    %346 = vmatpush1.bf16.msra.mxu0 %v248
    %347 = vmatprep.subr.bf16.mxu0 0
    %348 = vmatpush1.bf16.msra.mxu0 %v249
    %349 = vmatprep.subr.bf16.mxu0 0
    %350 = vmatpush1.bf16.msra.mxu0 0
    %351 = vmatprep.subr.bf16.mxu0 0
    %352 = vmatpush1.bf16.msra.mxu0 0
    %353 = vmatprep.subr.bf16.mxu0 0
    %354 = vmatpush1.bf16.msra.mxu0 0
    %355 = vmatprep.subr.bf16.mxu0 0
    %356 = vmatpush1.bf16.msra.mxu0 0
    %357 = vmatprep.subr.bf16.mxu0 0
    %358 = vmatpush1.bf16.msra.mxu0 0
    %359 = vmatprep.subr.bf16.mxu0 0
    %360 = vmatpush1.bf16.msra.mxu0 0
    %361 = vmatprep.subr.bf16.mxu0 0
    %362 = vmatpush1.bf16.msra.mxu0 0
    %363 = vmatprep.mubr.bf16.mxu0 %v277
    %364 = vmatmul.mubr.bf16.gmra.mrb[0].mxu0 %v113
    %v365 = vpop.f32.mrb[0].mxu0
    %v366 = vadd.f32 %v317, %v365
    %v367 = vpop.f32.mrb[0].mxu0
    %v368 = vpop.f32.mrb[0].mxu0
    %v369 = vadd.f32 %v320, %v368
    %v370 = vpop.f32.mrb[0].mxu0
    %371 = vmatprep.mubr.bf16.mxu0 %v280
    %372 = vmatmul.mubr.bf16.gmra.mrb[0].mxu0 %v117
    %v373 = vpop.f32.mrb[0].mxu0
    %v374 = vadd.f32 %v325, %v373
    %v375 = vpop.f32.mrb[0].mxu0
    %v376 = vpop.f32.mrb[0].mxu0
    %v377 = vadd.f32 %v328, %v376
    %v378 = vpop.f32.mrb[0].mxu0
    %379 = vdwg.mxu0
    %v380 = vmax.f32 %v366, 0.0
    %v381 = vmax.f32 %v369, 0.0
    %v382 = vmax.f32 %v374, 0.0
    %v383 = vmax.f32 %v377, 0.0
    %v384 = vld [vmem:[%s3] sm:$0xff]
    %v385 = vld [vmem:[%s3 + $0x8] sm:$0xff]
    %v386 = vmul.f32 %v380, %v384
    %v387 = vmul.f32 %v381, %v385
    %v388 = vadd.f32 %v386, %v387
    %v389 = vrot.slane %v388, 4
    %v390 = vadd.f32 %v388, %v389
    %v391 = vrot.slane %v390, 2
    %v392 = vadd.f32 %v390, %v391
    %v393 = vrot.slane %v392, 1
    %v394 = vadd.f32 %v392, %v393
    %395 = vadd.xlane.f32.xlu0 %v394
    %v396 = vpop.xlane.xlu0 %395
    %s397 = scalar_lea.vmem %s3, 16
    %v398 = vld [vmem:[%s397] sm:$0xff]
    %v399 = vld [vmem:[%s397 + $0x8] sm:$0xff]
    %v400 = vmul.f32 %v380, %v398
    %v401 = vmul.f32 %v381, %v399
    %v402 = vadd.f32 %v400, %v401
    %v403 = vrot.slane %v402, 4
    %v404 = vadd.f32 %v402, %v403
    %v405 = vrot.slane %v404, 2
    %v406 = vadd.f32 %v404, %v405
    %v407 = vrot.slane %v406, 1
    %v408 = vadd.f32 %v406, %v407
    %409 = vadd.xlane.f32.xlu0 %v408
    %v410 = vpop.xlane.xlu0 %409
    %vm411 = vcmask 7168
    %v412 = vsel %vm411, %v396, %v410
    %v413 = vmul.f32 %v382, %v384
    %v414 = vmul.f32 %v383, %v385
    %v415 = vadd.f32 %v413, %v414
    %v416 = vrot.slane %v415, 4
    %v417 = vadd.f32 %v415, %v416
    %v418 = vrot.slane %v417, 2
    %v419 = vadd.f32 %v417, %v418
    %v420 = vrot.slane %v419, 1
    %v421 = vadd.f32 %v419, %v420
    %422 = vadd.xlane.f32.xlu0 %v421
    %v423 = vpop.xlane.xlu0 %422
    %v424 = vmul.f32 %v382, %v398
    %v425 = vmul.f32 %v383, %v399
    %v426 = vadd.f32 %v424, %v425
    %v427 = vrot.slane %v426, 4
    %v428 = vadd.f32 %v426, %v427
    %v429 = vrot.slane %v428, 2
    %v430 = vadd.f32 %v428, %v429
    %v431 = vrot.slane %v430, 1
    %v432 = vadd.f32 %v430, %v431
    %433 = vadd.xlane.f32.xlu0 %v432
    %v434 = vpop.xlane.xlu0 %433
    %v435 = vsel %vm411, %v423, %v434
    %v437 = vrot.slane %v435, 7
    %vm439 = vcmask 1040384
    %v440 = vsel %vm439, %v412, %v437
    %v441 = vld [vmem:[%s4] sm:$0x1]
    %v443 = vlaneseq
    %v444 = vshrl.u32 %v443, 7
    %v445 = vsub.s32 0, %v444
    %v446 = vrot.slane %v441, %v445
    %v448 = vadd.f32 %v440, %v446
    %vm449 = vcmask 9216
    %450 = vst.msk [vmem:[#allocation2] sm:$0x3] %vm449, %v448
    // Predicated region
    $region22: #{one_layer_encoder_forward.1} parent=1 // pred_check
      _
    $region23: #{one_layer_encoder_forward.1} parent=1 // pred_check_branch
      %452 = sbr.rel (0) target = $region25
    $region24: #{one_layer_encoder_forward.1} parent=1 // pred_region
      %s454 = ssub.s32 32, 32
      %455 = vsyncadd [#allocation3], %s454
      %s457 = sshll.u32 [#allocation2], 4
      %s458 = int_to_ptr.vmem [resolvable:$true] %s457
      %460 = dma.vmem_to_hbm [thread:$0]  %s458, 32, %s5, [#allocation3]
    $region25: #{one_layer_encoder_forward.1} parent=1 // pred_fallthru
      _
    // Predicated region
    $region26: #{one_layer_encoder_forward.1} parent=1 // pred_check
      _
    $region27: #{one_layer_encoder_forward.1} parent=1 // pred_check_branch
      %462 = sbr.rel (0) target = $region29
    $region28: #{one_layer_encoder_forward.1} parent=1 // pred_region
      %463 = dma.done [#allocation3], 32
    $region29: #{one_layer_encoder_forward.1} parent=1 // pred_fallthru
      _
    %464 = vsyncpa [#allocation3], 1

</llo_original>
